<compile_context>
chip_gen: v7x
topology: tpu7x:2x2x1
jax: 0.10.0
libtpu: 0.0.40
codegen_flags: <defaults>
</compile_context>

<pallas_src>
import math

import jax
import jax.numpy as jnp
from jax.experimental import pallas as pl
from jax.experimental.pallas import tpu as pltpu


def _round_up(x, m):
    return ((x + m - 1) // m) * m


def _pick_row_tile(rows, cap, sublane):
    """Row tile: multiple of `sublane`, <= cap, and >= 2 grid steps whenever
    rows > sublane so the 'parallel' row axis can use both v7x TensorCores."""
    if rows <= sublane:
        tile = sublane
    else:
        half = _round_up((rows + 1) // 2, sublane)  # ceil(rows/2), aligned
        tile = min(cap, half)
    # Never make the block (much) larger than the array itself.
    return min(tile, _round_up(rows, 8))


def _gmm_linear_kernel(x_ref, w_ref, b_ref, o_ref):
    # x_ref: (TILE_R, H) f32     w_ref: (H, O_pad) operand dtype
    # b_ref: (1, O_pad) f32      o_ref: (TILE_R, O_pad) out dtype
    x = x_ref[...]
    w = w_ref[...]
    if x.dtype != w.dtype:
        # In-kernel cast rides idle VPU slots (kernel is HBM-bound); avoids a
        # separate un-fused XLA cast pass over x in the wrapper.
        x = x.astype(w.dtype)
    acc = jnp.dot(x, w, preferred_element_type=jnp.float32)
    o_ref[...] = (acc + b_ref[...]).astype(o_ref.dtype)


def gmm_linear(x, w_t, b_row, *, out_features, out_dtype=jnp.float32,
               tile_r=2048):
    """Pallas linear head: (rows, H) @ (H, O_pad) + b, sliced to out_features.

    x      : (rows, hiddens)        float32 (cast to w_t.dtype inside kernel)
    w_t    : (hiddens, O_pad)       operand dtype, pre-transposed, lane-padded
    b_row  : (1, O_pad)             float32, lane-padded
    returns: (rows, out_features)   out_dtype
    """
    rows, hiddens = x.shape
    out_p = w_t.shape[1]

    x_b = jnp.dtype(x.dtype).itemsize
    w_b = jnp.dtype(w_t.dtype).itemsize
    o_b = jnp.dtype(out_dtype).itemsize

    sublane = 16 if min(x_b, w_b, o_b) < 4 else 8
    tile = _pick_row_tile(rows, tile_r, sublane)
    num_tiles = pl.cdiv(rows, tile)  # boundary block masked by Pallas; no jnp.pad.
    # NOTE: boundary masking is safe because the op is purely per-row; it would
    # NOT be safe if a cross-row reduction were later added to this kernel.

    cost = pl.CostEstimate(
        flops=2 * rows * hiddens * out_p,
        transcendentals=0,
        bytes_accessed=(rows * hiddens * x_b      # x
                        + hiddens * out_p * w_b   # W^T (resident)
                        + out_p * 4               # bias
                        + rows * out_p * o_b),    # output
    )

    out = pl.pallas_call(
        _gmm_linear_kernel,
        out_shape=jax.ShapeDtypeStruct((rows, out_p), out_dtype),
        grid_spec=pl.GridSpec(
            grid=(num_tiles,),
            in_specs=[
                pl.BlockSpec((tile, hiddens), lambda i: (i, 0)),   # x: tiled rows
                pl.BlockSpec((hiddens, out_p), lambda i: (0, 0)),  # W^T: resident
                pl.BlockSpec((1, out_p), lambda i: (0, 0)),        # bias: resident
            ],
            out_specs=pl.BlockSpec((tile, out_p), lambda i: (i, 0)),
        ),
        compiler_params=pltpu.CompilerParams(
            # Double-buffered working set is ~2.6 MiB even at tile=2048, so the
            # 32 MiB scoped-VMEM default is left untouched (v7x-safe).
            dimension_semantics=("parallel",),
        ),
        cost_estimate=cost,
    )(x, w_t, b_row)

    if out_features != out_p:
        # Fuses with the consumer under jax.jit (no standalone narrowing pass).
        out = out[:, :out_features]
    return out


class MDRNNBasePallas:
    """JAX/Pallas mirror of _MDRNNBase.__init__ parameter shapes."""

    def __init__(self, latents, actions, hiddens, gaussians, key,
                 operand_dtype=jnp.float32, out_dtype=jnp.float32):
        self.latents = latents
        self.actions = actions
        self.hiddens = hiddens
        self.gaussians = gaussians
        self.operand_dtype = operand_dtype
        self.out_dtype = out_dtype

        out_features = (2 * latents + 1) * gaussians + 2
        self.out_features = out_features
        out_p = _round_up(out_features, 128)

        # Deterministic init mimicking torch.nn.Linear default:
        # U(-1/sqrt(in_features), 1/sqrt(in_features)) for weight and bias.
        kw, kb = jax.random.split(key)
        bound = 1.0 / math.sqrt(hiddens)
        self.gmm_weight = jax.random.uniform(
            kw, (out_features, hiddens), jnp.float32, -bound, bound)
        self.gmm_bias = jax.random.uniform(
            kb, (out_features,), jnp.float32, -bound, bound)

        # Kernel-ready copies prepared ONCE: transposed, lane-padded to a
        # multiple of 128, weight cast to the operand dtype (bf16 halves
        # weight HBM/MXU traffic on v6e/v7x; accumulation stays f32 in-kernel).
        w_t = jnp.zeros((hiddens, out_p), jnp.float32)
        w_t = w_t.at[:, :out_features].set(self.gmm_weight.T)
        self._w_packed = w_t.astype(operand_dtype)

        b_row = jnp.zeros((1, out_p), jnp.float32)
        self._b_packed = b_row.at[:, :out_features].set(self.gmm_bias[None, :])

        def head(hidden_states, w_packed, b_packed):
            lead = hidden_states.shape[:-1]
            flat = hidden_states.reshape(-1, hiddens)   # stays f32; cast in-kernel
            out = gmm_linear(flat, w_packed, b_packed,
                             out_features=out_features, out_dtype=out_dtype)
            return out.reshape(*lead, out_features)

        # One jit around kernel + reshape + slice so nothing materializes twice.
        self._head = jax.jit(head)

    def gmm_head(self, hidden_states):
        # hidden_states: (..., hiddens) -> (..., (2*latents+1)*gaussians + 2)
        return self._head(hidden_states, self._w_packed, self._b_packed)


if __name__ == "__main__":
    latents, actions, hiddens, gaussians = 8, 2, 32, 5
    seq, batch = 4, 2
    out_features = (2 * latents + 1) * gaussians + 2  # 87

    key = jax.random.PRNGKey(0)
    k_params, k_x = jax.random.split(key)

    # Synthetic RNN hidden states, (seq, batch, hiddens) as in MDRNN.forward.
    hidden_states = jax.random.normal(k_x, (seq, batch, hiddens), jnp.float32)

    # f32 operand / f32 store path (default; recommended on v5e) -- tight tol.
    model_f32 = MDRNNBasePallas(latents, actions, hiddens, gaussians, k_params)
    out_f32 = jax.block_until_ready(model_f32.gmm_head(hidden_states))
    ref = hidden_states @ model_f32.gmm_weight.T + model_f32.gmm_bias
    assert out_f32.shape == (seq, batch, out_features)
    assert jnp.allclose(out_f32, ref, atol=1e-4, rtol=1e-4)

    # Non-divisible row count (15 rows) -> exercises Pallas boundary masking
    # and the >=2-tile (megacore) path, no wrapper-side padding.
    hs_ragged = jax.random.normal(k_x, (5, 3, hiddens), jnp.float32)
    out_ragged = jax.block_until_ready(model_f32.gmm_head(hs_ragged))
    ref_ragged = hs_ragged @ model_f32.gmm_weight.T + model_f32.gmm_bias
    assert out_ragged.shape == (5, 3, out_features)
    assert jnp.allclose(out_ragged, ref_ragged, atol=1e-4, rtol=1e-4)

    # bf16 operand + bf16 store path (recommended on v6e/v7x); f32 accumulation
    # and f32 bias add inside the kernel, x cast to bf16 on the VPU in-kernel.
    model_bf16 = MDRNNBasePallas(latents, actions, hiddens, gaussians, k_params,
                                 operand_dtype=jnp.bfloat16,
                                 out_dtype=jnp.bfloat16)
    out_bf16 = jax.block_until_ready(model_bf16.gmm_head(hidden_states))
    assert out_bf16.shape == (seq, batch, out_features)
    assert out_bf16.dtype == jnp.bfloat16
    assert jnp.allclose(out_bf16.astype(jnp.float32), ref, atol=5e-2, rtol=5e-2)

    print("KERNEL_OK")
</pallas_src>

<mosaic_0001>
module attributes {stable_mosaic.version = 11 : i64} {
  func.func @_gmm_linear_kernel(%arg0: i32, %arg1: memref<8x32xf32, #tpu.memory_space<vmem>>, %arg2: memref<32x128xf32, #tpu.memory_space<vmem>>, %arg3: memref<1x128xf32, #tpu.memory_space<vmem>>, %arg4: memref<8x128xf32, #tpu.memory_space<vmem>>) attributes {dimension_semantics = [#tpu.dimension_semantics<parallel>], iteration_bounds = array<i64: 1>, scalar_prefetch = 0 : i64, scratch_operands = 0 : i64, tpu.core_type = #tpu.core_type<tc>, window_params = [{transform_indices = @transform_0, window_bounds = array<i64: 8, 32>}, {pipeline_mode = #tpu.pipeline_mode<synchronous>, transform_indices = @transform_1, window_bounds = array<i64: 32, 128>}, {pipeline_mode = #tpu.pipeline_mode<synchronous>, transform_indices = @transform_2, window_bounds = array<i64: 1, 128>}, {transform_indices = @transform_3, window_bounds = array<i64: 8, 128>}]} {
    %c0 = arith.constant 0 : index
    %c0_0 = arith.constant 0 : index
    %0 = vector.load %arg1[%c0, %c0_0] : memref<8x32xf32, #tpu.memory_space<vmem>>, vector<8x32xf32>
    %c0_1 = arith.constant 0 : index
    %c0_2 = arith.constant 0 : index
    %1 = vector.load %arg2[%c0_1, %c0_2] : memref<32x128xf32, #tpu.memory_space<vmem>>, vector<32x128xf32>
    %cst = arith.constant dense<0.000000e+00> : vector<8x128xf32>
    %2 = tpu.matmul %0, %1, %cst {dimension_numbers = #tpu.dot_dimension_numbers<[1], [0], [0], [1], [0, 0, 1, 1], [], []>} : vector<8x32xf32>, vector<32x128xf32>, vector<8x128xf32> -> vector<8x128xf32>
    %c0_3 = arith.constant 0 : index
    %c0_4 = arith.constant 0 : index
    %3 = vector.load %arg3[%c0_3, %c0_4] : memref<1x128xf32, #tpu.memory_space<vmem>>, vector<1x128xf32>
    %4 = vector.broadcast %3 : vector<1x128xf32> to vector<8x128xf32>
    %5 = arith.addf %2, %4 : vector<8x128xf32>
    %c0_5 = arith.constant 0 : index
    %c0_6 = arith.constant 0 : index
    %6 = vector.load %arg4[%c0_5, %c0_6] : memref<8x128xf32, #tpu.memory_space<vmem>>, vector<8x128xf32>
    tpu.vector_store %arg4[%c0_5, %c0_6], %5 {strides = array<i32>} : memref<8x128xf32, #tpu.memory_space<vmem>>, vector<8x128xf32>,
    return
  }
  func.func @transform_0(%arg0: i32) -> (i32, i32) {
    %c0_i32 = arith.constant 0 : i32
    %c0_i32_0 = arith.constant 0 : i32
    return %arg0, %c0_i32 : i32, i32
  }
  func.func @transform_1(%arg0: i32) -> (i32, i32) {
    %c0_i32 = arith.constant 0 : i32
    %c0_i32_0 = arith.constant 0 : i32
    %c0_i32_1 = arith.constant 0 : i32
    return %c0_i32, %c0_i32_0 : i32, i32
  }
  func.func @transform_2(%arg0: i32) -> (i32, i32) {
    %c0_i32 = arith.constant 0 : i32
    %c0_i32_0 = arith.constant 0 : i32
    %c0_i32_1 = arith.constant 0 : i32
    return %c0_i32, %c0_i32_0 : i32, i32
  }
  func.func @transform_3(%arg0: i32) -> (i32, i32) {
    %c0_i32 = arith.constant 0 : i32
    %c0_i32_0 = arith.constant 0 : i32
    return %arg0, %c0_i32 : i32, i32
  }
}

</mosaic_0001>

<llo_original>
// kernel: head.1
$region0: #{head.1}
  #allocation0 [shape = 'u32[]', space=smem, size = 0x4, offset = 0x4, fixed_abs, tag = 'smem constant byte address 0x4 - core index']
  #allocation1 [shape = 'u32[144,128]{1,0:T(1,128)}', space=vmem, size = 0x12000, scoped, tag = 'internal scratch']
  %s0 = inlined_call_operand.hbm [shape: f32[8,32], index: 0, kind: input, shape index: {}]
  %s1 = inlined_call_operand.hbm [shape: f32[32,128], index: 1, kind: input, shape index: {}]
  %s2 = inlined_call_operand.vmem [shape: f32[1,128], index: 2, kind: input, shape index: {}]
  %s3 = inlined_call_operand.hbm [shape: f32[8,128], index: 3, kind: output, shape index: {}]
  %s4 = sld [smem:[#allocation0]]
  $region30: #{head.1} parent=0
    _
  %s6 = ssub.s32 1, %s4
  %s7 = scalar_select 0, %s6, %s4
  $region1: #{head.1} parent=0
    #allocation2 [shape = 'u8[4096]{0}', space=vmem, size = 0x1000, scoped, tag = 'input window, operand 0, single buffered']
    #allocation3 [shape = 's32[1]{0}', space=sflag, size = 0x4, scoped, tag = 'scoped memory for head.1']
    #allocation4 [shape = 's32[1]{0}', space=sflag, size = 0x4, scoped, tag = 'scoped memory for head.1']
    #allocation5 [shape = 'u8[16384]{0}', space=vmem, size = 0x4000, scoped, tag = 'input window, operand 1, single buffered']
    #allocation6 [shape = 's32[1]{0}', space=sflag, size = 0x4, scoped, tag = 'scoped memory for head.1']
    #allocation7 [shape = 'u8[4096]{0}', space=vmem, size = 0x1000, scoped, tag = 'output window, operand 0, single buffered']
    %8 = vsyncpa [#allocation3], 0
    %9 = vsyncpa [#allocation6], 0
    %10 = vsyncpa [#allocation4], 0
    // Predicated region
    $region2: #{head.1} parent=1 // pred_check
      _
    $region3: #{head.1} parent=1 // pred_check_branch
      %12 = sbr.rel (0) target = $region5
    $region4: #{head.1} parent=1 // pred_region
      %s14 = ssub.s32 128, 128
      %15 = vsyncadd [#allocation3], %s14
      %s17 = sshll.u32 [#allocation2], 4
      %s18 = int_to_ptr.vmem [resolvable:$true] %s17
      %20 = dma.hbm_to_vmem [thread:$0]  %s0, 128, %s18, [#allocation3]
    $region5: #{head.1} parent=1 // pred_fallthru
      _
    // Predicated region
    $region6: #{head.1} parent=1 // pred_check
      _
    $region7: #{head.1} parent=1 // pred_check_branch
      %22 = sbr.rel (0) target = $region9
    $region8: #{head.1} parent=1 // pred_region
      %s24 = ssub.s32 512, 512
      %25 = vsyncadd [#allocation6], %s24
      %s26 = sshll.u32 [#allocation5], 4
      %s27 = int_to_ptr.vmem [resolvable:$true] %s26
      %32 = dma.hbm_to_vmem [thread:$0]  %s1, 512, %s27, [#allocation6], 128, 128, 8
    $region9: #{head.1} parent=1 // pred_fallthru
      _
    // Predicated region
    $region10: #{head.1} parent=1 // pred_check
      _
    $region11: #{head.1} parent=1 // pred_check_branch
      %34 = sbr.rel (0) target = $region13
    $region12: #{head.1} parent=1 // pred_region
      _
    $region13: #{head.1} parent=1 // pred_fallthru
      _
    // Predicated region
    $region14: #{head.1} parent=1 // pred_check
      _
    $region15: #{head.1} parent=1 // pred_check_branch
      %36 = sbr.rel (0) target = $region17
    $region16: #{head.1} parent=1 // pred_region
      %37 = dma.done [#allocation3], 128
    $region17: #{head.1} parent=1 // pred_fallthru
      _
    // Predicated region
    $region18: #{head.1} parent=1 // pred_check
      _
    $region19: #{head.1} parent=1 // pred_check_branch
      %39 = sbr.rel (0) target = $region21
    $region20: #{head.1} parent=1 // pred_region
      %40 = dma.done [#allocation6], 512
    $region21: #{head.1} parent=1 // pred_fallthru
      _
    %v41 = vld [vmem:[#allocation2] sm:$0xff]
    %v42 = vld [vmem:[#allocation5] sm:$0xff]
    %v43 = vld [vmem:[#allocation5 + $0x8] sm:$0xff]
    %v44 = vld [vmem:[#allocation5 + $0x10] sm:$0xff]
    %v45 = vld [vmem:[#allocation5 + $0x18] sm:$0xff]
    %v46 = vld [vmem:[%s2] sm:$0x1]
    %v48 = vlaneseq
    %v49 = vshrl.u32 %v48, 7
    %v50 = vsub.s32 0, %v49
    %v51 = vrot.slane %v46, %v50
    %vm53 = vcmask 261120
    %v55 = vsel %vm53, %v41, 0
    %57 = vmatprep.subr.mxu0 0.0
    %58 = vmatpush1.msra.mxu0 %v42
    %59 = vmatprep.subr.mxu0 0.0
    %60 = vmatpush1.msra.mxu0 %v43
    %61 = vmatprep.subr.mxu0 0.0
    %62 = vmatpush1.msra.mxu0 %v44
    %63 = vmatprep.subr.mxu0 0.0
    %64 = vmatpush1.msra.mxu0 %v45
    %65 = vmatprep.subr.mxu0 0.0
    %66 = vmatpush1.msra.mxu0 0.0
    %67 = vmatprep.subr.mxu0 0.0
    %68 = vmatpush1.msra.mxu0 0.0
    %69 = vmatprep.subr.mxu0 0.0
    %70 = vmatpush1.msra.mxu0 0.0
    %71 = vmatprep.subr.mxu0 0.0
    %72 = vmatpush1.msra.mxu0 0.0
    %73 = vmatprep.subr.mxu0 0.0
    %74 = vmatpush1.msra.mxu0 0.0
    %75 = vmatprep.subr.mxu0 0.0
    %76 = vmatpush1.msra.mxu0 0.0
    %77 = vmatprep.subr.mxu0 0.0
    %78 = vmatpush1.msra.mxu0 0.0
    %79 = vmatprep.subr.mxu0 0.0
    %80 = vmatpush1.msra.mxu0 0.0
    %81 = vmatprep.subr.mxu0 0.0
    %82 = vmatpush1.msra.mxu0 0.0
    %83 = vmatprep.subr.mxu0 0.0
    %84 = vmatpush1.msra.mxu0 0.0
    %85 = vmatprep.subr.mxu0 0.0
    %86 = vmatpush1.msra.mxu0 0.0
    %87 = vmatprep.subr.mxu0 0.0
    %88 = vmatpush1.msra.mxu0 0.0
    %89 = vmatprep.subr.mxu0 0.0
    %90 = vmatpush1.msra.mxu0 0.0
    %91 = vmatprep.subr.mxu0 0.0
    %92 = vmatpush1.msra.mxu0 0.0
    %93 = vmatprep.subr.mxu0 0.0
    %94 = vmatpush1.msra.mxu0 0.0
    %95 = vmatprep.subr.mxu0 0.0
    %96 = vmatpush1.msra.mxu0 0.0
    %97 = vmatprep.subr.mxu0 0.0
    %98 = vmatpush1.msra.mxu0 0.0
    %99 = vmatprep.subr.mxu0 0.0
    %100 = vmatpush1.msra.mxu0 0.0
    %101 = vmatprep.subr.mxu0 0.0
    %102 = vmatpush1.msra.mxu0 0.0
    %103 = vmatprep.subr.mxu0 0.0
    %104 = vmatpush1.msra.mxu0 0.0
    %105 = vmatprep.subr.mxu0 0.0
    %106 = vmatpush1.msra.mxu0 0.0
    %107 = vmatprep.subr.mxu0 0.0
    %108 = vmatpush1.msra.mxu0 0.0
    %109 = vmatprep.subr.mxu0 0.0
    %110 = vmatpush1.msra.mxu0 0.0
    %111 = vmatprep.subr.mxu0 0.0
    %112 = vmatpush1.msra.mxu0 0.0
    %113 = vmatprep.subr.mxu0 0.0
    %114 = vmatpush1.msra.mxu0 0.0
    %115 = vmatprep.subr.mxu0 0.0
    %116 = vmatpush1.msra.mxu0 0.0
    %117 = vmatprep.subr.mxu0 0.0
    %118 = vmatpush1.msra.mxu0 0.0
    %119 = vmatprep.subr.mxu0 0.0
    %120 = vmatpush1.msra.mxu0 0.0
    %121 = vmatprep.mubr.f32.mxu0 0.0
    %122 = vmatmul.mubr.f32.gmra.mrb[0].mxu0 %v55
    %v123 = vpop.f32.mrb[0].mxu0
    %v124 = vadd.f32 %v51, %v123
    %v125 = vpop.f32.mrb[0].mxu0
    %126 = vdwg.mxu0
    %127 = vst [vmem:[#allocation7] sm:$0xff] %v124
    // Predicated region
    $region22: #{head.1} parent=1 // pred_check
      _
    $region23: #{head.1} parent=1 // pred_check_branch
      %129 = sbr.rel (0) target = $region25
    $region24: #{head.1} parent=1 // pred_region
      %s131 = ssub.s32 128, 128
      %132 = vsyncadd [#allocation4], %s131
      %s134 = sshll.u32 [#allocation7], 4
      %s135 = int_to_ptr.vmem [resolvable:$true] %s134
      %137 = dma.vmem_to_hbm [thread:$0]  %s135, 128, %s3, [#allocation4]
    $region25: #{head.1} parent=1 // pred_fallthru
      _
    // Predicated region
    $region26: #{head.1} parent=1 // pred_check
      _
    $region27: #{head.1} parent=1 // pred_check_branch
      %139 = sbr.rel (0) target = $region29
    $region28: #{head.1} parent=1 // pred_region
      %140 = dma.done [#allocation4], 128
    $region29: #{head.1} parent=1 // pred_fallthru
      _
    %141 = vsyncpa [#allocation3], 1
    %142 = vsyncpa [#allocation6], 1
    %143 = vsyncpa [#allocation4], 1

</llo_original>
